<compile_context>
chip_gen: v7x
topology: tpu7x:2x2x1
jax: 0.10.0
libtpu: 0.0.40
codegen_flags: <defaults>
</compile_context>

<pallas_src>
import functools

import numpy as np
import jax
import jax.numpy as jnp
from jax.experimental import pallas as pl
from jax.experimental.pallas import tpu as pltpu

INIT_PIXEL = 5
HW = INIT_PIXEL * INIT_PIXEL
Z_DIM = 100
_BN_EPS = 1e-5
_LEAKY_SLOPE = 0.2
_LANE = 128


def _round_up(n, m):
    return ((n + m - 1) // m) * m


# ----------------------------------------------------------------------------
# Single fused Pallas kernel
# ----------------------------------------------------------------------------
def _generator_fused_kernel(x_ref, w1_ref, bn1g_ref, bn1b_ref,
                            w2_ref, csum_ref, cbc_ref, bn2g_ref, bn2b_ref,
                            w3_ref, bn3g_ref, bn3b_ref,
                            o_ref, *, inv_b, inv_bhw):
    f32 = jnp.float32
    bf16 = jnp.bfloat16

    def leaky(z):                              # slope 0.2 < 1  ->  max(z, 0.2z)
        return jnp.maximum(z, _LEAKY_SLOPE * z)

    # ---- linear1: Linear(100, 25*c4) + BatchNorm1d + LeakyReLU(0.2) ---------
    # Linear bias omitted: exactly cancelled by the BN mean subtraction.
    xb = x_ref[...].astype(bf16)
    y1 = jnp.dot(xb, w1_ref[...], preferred_element_type=f32)       # (B, 256) f32
    m1 = jnp.sum(y1, axis=0, keepdims=True) * inv_b                  # (1, 256)
    q1 = jnp.sum(y1 * y1, axis=0, keepdims=True) * inv_b
    r1 = jax.lax.rsqrt(q1 - m1 * m1 + _BN_EPS)
    scale1 = r1 * bn1g_ref[...]                                      # folded BN
    shift1 = bn1b_ref[...] - m1 * scale1
    h1 = leaky(y1 * scale1 + shift1)                                 # (B, 256)

    # ---- deconv1: ConvT(c4->c8) folded to GEMM + BatchNorm2d + LeakyReLU ----
    y2 = jnp.dot(h1.astype(bf16), w2_ref[...], preferred_element_type=f32)  # (B, 128)
    # Batch-reduce first, then ONE narrow channel-sum matmul for both moments.
    stats = jnp.concatenate(
        [jnp.sum(y2, axis=0, keepdims=True),
         jnp.sum(y2 * y2, axis=0, keepdims=True)], axis=0)           # (2, 128) f32
    ch = jnp.dot(stats, csum_ref[...], preferred_element_type=f32)   # (2, c8)
    m_ch = ch[0:1, :] * inv_bhw
    q_ch = ch[1:2, :] * inv_bhw
    r_ch = jax.lax.rsqrt(q_ch - m_ch * m_ch + _BN_EPS)
    # ONE broadcast matmul expands [r_c ; m_c*r_c] back to the 25*c8 lanes.
    exp_in = jnp.concatenate([r_ch, m_ch * r_ch], axis=0)            # (2, c8)
    expanded = jnp.dot(exp_in, cbc_ref[...], preferred_element_type=f32)  # (2, 128)
    scale2 = expanded[0:1, :] * bn2g_ref[...]
    shift2 = bn2b_ref[...] - expanded[1:2, :] * bn2g_ref[...]
    h2 = leaky(y2 * scale2 + shift2)                                 # (B, 128)

    # ---- deconv2: ConvT(c8->1) folded to GEMM + BatchNorm2d(1) + Sigmoid ----
    y3 = jnp.dot(h2.astype(bf16), w3_ref[...], preferred_element_type=f32)  # (B, 25)
    s3 = jnp.sum(jnp.sum(y3, axis=1, keepdims=True), axis=0, keepdims=True)
    q3 = jnp.sum(jnp.sum(y3 * y3, axis=1, keepdims=True), axis=0, keepdims=True)
    m3 = s3 * inv_bhw
    r3 = jax.lax.rsqrt(q3 * inv_bhw - m3 * m3 + _BN_EPS)
    g3 = bn3g_ref[0, 0]                                              # SMEM scalars
    b3 = bn3b_ref[0, 0]
    scale3 = r3 * g3
    shift3 = b3 - m3 * scale3
    z3 = y3 * scale3 + shift3
    # sigmoid(z) = 0.5 * (1 + tanh(z/2))  -> EUP, numerically stable, in [0, 1]
    o_ref[...] = 0.5 * (jnp.tanh(0.5 * z3) + 1.0)


# ----------------------------------------------------------------------------
# Init-time weight folding: ConvTranspose2d -> dense matrix on flattened NCHW
# ----------------------------------------------------------------------------
def _conv_tap_selector(H=INIT_PIXEL, W=INIT_PIXEL, K=3):
    """S[kh, kw, hw_in, hw_out] = 1 iff input pixel hw_in feeds output pixel
    hw_out through tap (kh, kw) of a 'same'-padded KxK cross-correlation."""
    S = np.zeros((K, K, H * W, H * W), np.float32)
    pad = K // 2
    for kh in range(K):
        for kw in range(K):
            for ho in range(H):
                hi = ho + kh - pad
                if not 0 <= hi < H:
                    continue
                for wo in range(W):
                    wi = wo + kw - pad
                    if not 0 <= wi < W:
                        continue
                    S[kh, kw, hi * W + wi, ho * W + wo] = 1.0
    return S


_TAP_SEL = jnp.asarray(_conv_tap_selector())


def _convT_weight_to_dense(w):
    """PyTorch ConvTranspose2d weight (Cin, Cout, 3, 3) with stride=1, pad=1
    -> dense (Cin*25, Cout*25) matrix acting on NCHW-flattened activations.
    Every entry is either 0 or a single original weight value."""
    cin, cout = w.shape[0], w.shape[1]
    w_eff = jnp.flip(w, axis=(2, 3))          # equivalent cross-correlation kernel
    mat = jnp.einsum('abkl,klpq->apbq', w_eff.astype(jnp.float32), _TAP_SEL)
    return mat.reshape(cin * HW, cout * HW)


# ----------------------------------------------------------------------------
# Parameters
# ----------------------------------------------------------------------------
def init_params(key, channels):
    c4, c8 = channels // 4, channels // 8
    feat = HW * c4
    ks = jax.random.split(key, 6)
    return {
        # linear1: Linear(100, 25*c4) + BatchNorm1d
        "w1": 0.05 * jax.random.normal(ks[0], (Z_DIM, feat), jnp.float32),
        "b1": 0.05 * jax.random.normal(ks[1], (feat,), jnp.float32),  # absorbed by BN
        "bn1_g": 1.0 + 0.1 * jax.random.normal(ks[2], (feat,), jnp.float32),
        "bn1_b": 0.1 * jax.random.normal(ks[3], (feat,), jnp.float32),
        # deconv1: ConvTranspose2d(c4, c8, 3, 1, 1, bias=False) + BatchNorm2d(c8)
        "w2": 0.1 * jax.random.normal(ks[4], (c4, c8, 3, 3), jnp.float32),
        "bn2_g": jnp.ones((c8,), jnp.float32),
        "bn2_b": jnp.zeros((c8,), jnp.float32),
        # deconv2: ConvTranspose2d(c8, 1, 3, 1, 1, bias=False) + BatchNorm2d(1)
        "w3": 0.1 * jax.random.normal(ks[5], (c8, 1, 3, 3), jnp.float32),
        "bn3_g": jnp.ones((1,), jnp.float32),
        "bn3_b": jnp.zeros((1,), jnp.float32),
    }


def prepare_kernel_params(params, channels):
    """One-time folding of module parameters into GEMM-ready kernel operands.
    Feature dims are zero-padded to lane multiples (200->256, 100->128); the
    padded gamma/beta and the matching weight rows/cols are exact zeros, so
    padded columns stay identically zero through the whole network."""
    c4, c8 = channels // 4, channels // 8
    feat1, feat2 = HW * c4, HW * c8                    # 200, 100
    feat1_p = _round_up(feat1, _LANE)                  # 256
    feat2_p = _round_up(feat2, _LANE)                  # 128
    f32, bf16 = jnp.float32, jnp.bfloat16

    w1 = jnp.pad(params["w1"].astype(f32), ((0, 0), (0, feat1_p - feat1)))
    w2e = jnp.pad(_convT_weight_to_dense(params["w2"]),
                  ((0, feat1_p - feat1), (0, feat2_p - feat2)))
    w3e = jnp.pad(_convT_weight_to_dense(params["w3"]),
                  ((0, feat2_p - feat2), (0, 0)))

    # Narrow 0/1 channel-sum matrix (feat2_p, c8) and its transpose for the
    # broadcast back to lanes.  Padded rows/cols are zero.
    chan_ind = jnp.kron(jnp.eye(c8, dtype=f32), jnp.ones((HW, 1), f32))   # (100, c8)
    csum = jnp.pad(chan_ind, ((0, feat2_p - feat2), (0, 0)))              # (128, c8)
    cbc = jnp.transpose(csum)                                             # (c8, 128)

    return {
        # bf16 GEMM operands (f32 accumulation in-kernel), f32 everything else.
        "w1": w1.astype(bf16),                                            # (100, 256)
        # params["b1"] intentionally dropped: cancelled by BN mean subtraction.
        "bn1g": jnp.pad(params["bn1_g"], (0, feat1_p - feat1)).reshape(1, -1).astype(f32),
        "bn1b": jnp.pad(params["bn1_b"], (0, feat1_p - feat1)).reshape(1, -1).astype(f32),
        "w2e": w2e.astype(bf16),                                          # (256, 128)
        "csum": csum,                                                     # (128, c8)
        "cbc": cbc,                                                       # (c8, 128)
        "bn2g": jnp.pad(jnp.repeat(params["bn2_g"], HW),
                        (0, feat2_p - feat2)).reshape(1, -1).astype(f32),
        "bn2b": jnp.pad(jnp.repeat(params["bn2_b"], HW),
                        (0, feat2_p - feat2)).reshape(1, -1).astype(f32),
        "w3e": w3e.astype(bf16),                                          # (128, 25)
        "bn3g": params["bn3_g"].reshape(1, 1).astype(f32),                # SMEM scalar
        "bn3b": params["bn3_b"].reshape(1, 1).astype(f32),                # SMEM scalar
    }


# ----------------------------------------------------------------------------
# Forward pass: one fused pallas_call
# ----------------------------------------------------------------------------
def generator_forward(kp, x, y=None):
    # y (condition) is unused: num_condition is forced to 0 in the module.
    B = x.shape[0]
    x2d = x.reshape(B, -1).astype(jnp.float32)               # (B, 100)

    operands = (x2d, kp["w1"], kp["bn1g"], kp["bn1b"],
                kp["w2e"], kp["csum"], kp["cbc"], kp["bn2g"], kp["bn2b"],
                kp["w3e"], kp["bn3g"], kp["bn3b"])

    vmem = pl.BlockSpec(memory_space=pltpu.MemorySpace.VMEM)
    smem = pl.BlockSpec(memory_space=pltpu.MemorySpace.SMEM)
    in_specs = [vmem] * 10 + [smem, smem]                    # bn3 scalars in SMEM

    feat1p = kp["w1"].shape[1]                               # 256
    feat2p = kp["w2e"].shape[1]                              # 128
    c8 = kp["csum"].shape[1]
    flops = (2 * B * (x2d.shape[1] * feat1p                  # linear1
                      + feat1p * feat2p                      # deconv1 GEMM
                      + feat2p * HW)                         # deconv2 GEMM
             + 2 * 2 * feat2p * c8 + 2 * 2 * c8 * feat2p)    # BN2d stats + expand
    transcendentals = B * HW + feat1p + c8 + 1               # tanh + rsqrt
    bytes_accessed = int(sum(o.size * o.dtype.itemsize for o in operands)
                         + 4 * B * HW)

    out = pl.pallas_call(
        functools.partial(_generator_fused_kernel,
                          inv_b=1.0 / B, inv_bhw=1.0 / (B * HW)),
        out_shape=jax.ShapeDtypeStruct((B, HW), jnp.float32),
        in_specs=in_specs,
        out_specs=vmem,
        cost_estimate=pl.CostEstimate(flops=flops,
                                      transcendentals=transcendentals,
                                      bytes_accessed=bytes_accessed),
    )(*operands)
    # NCHW output (C_out == 1): pure reshape, no transpose needed.
    return out.reshape(B, 1, INIT_PIXEL, INIT_PIXEL)


# ----------------------------------------------------------------------------
# Pure-JAX reference (validation only).  It mirrors the kernel's bf16 rounding
# of GEMM operands (weights / activations) so the comparison validates the
# conv folding / BN / activation structure at a tight tolerance; accumulation
# and all BN statistics are f32, exactly as in the kernel.
# ----------------------------------------------------------------------------
def _reference_forward(params, x, channels):
    c4 = channels // 4
    B = x.shape[0]
    f32 = jnp.float32
    HI = jax.lax.Precision.HIGHEST

    def rnd(a):                                   # bf16 operand rounding
        return a.astype(jnp.bfloat16).astype(f32)

    def bn(z, gamma, beta, axes):
        mean = jnp.mean(z, axis=axes, keepdims=True)
        var = jnp.mean((z - mean) ** 2, axis=axes, keepdims=True)
        return (z - mean) / jnp.sqrt(var + _BN_EPS) * gamma + beta

    def leaky(z):
        return jnp.where(z >= 0, z, _LEAKY_SLOPE * z)

    def convT_same(h, w):   # h: NCHW, w: (Cin, Cout, 3, 3)
        w_oihw = jnp.transpose(jnp.flip(w, axis=(2, 3)), (1, 0, 2, 3))
        return jax.lax.conv_general_dilated(
            rnd(h), rnd(w_oihw), window_strides=(1, 1), padding=((1, 1), (1, 1)),
            dimension_numbers=('NCHW', 'OIHW', 'NCHW'), precision=HI)

    h = jnp.dot(rnd(x.reshape(B, -1).astype(f32)), rnd(params["w1"]),
                precision=HI) + params["b1"]
    h = leaky(bn(h, params["bn1_g"], params["bn1_b"], axes=(0,)))
    h = h.reshape(B, c4, INIT_PIXEL, INIT_PIXEL)
    h = convT_same(h, params["w2"])
    h = leaky(bn(h, params["bn2_g"].reshape(1, -1, 1, 1),
                 params["bn2_b"].reshape(1, -1, 1, 1), axes=(0, 2, 3)))
    h = convT_same(h, params["w3"])
    h = bn(h, params["bn3_g"].reshape(1, -1, 1, 1),
           params["bn3_b"].reshape(1, -1, 1, 1), axes=(0, 2, 3))
    return jax.nn.sigmoid(h)


# ----------------------------------------------------------------------------
if __name__ == "__main__":
    channels = 32            # -> c//4 = 8, c//8 = 4
    batch = 2

    key = jax.random.PRNGKey(0)
    k_params, k_x = jax.random.split(key)
    params = init_params(k_params, channels)
    kparams = prepare_kernel_params(params, channels)

    # Noise input in the NCHW-ish shape the GAN training loop would feed:
    x = jax.random.normal(k_x, (batch, Z_DIM, 1, 1), jnp.float32)
    y = jnp.zeros((batch, 1), jnp.float32)   # condition, unused (num_condition=0)

    fwd = jax.jit(generator_forward)
    out = jax.block_until_ready(fwd(kparams, x, y))

    assert out.shape == (batch, 1, INIT_PIXEL, INIT_PIXEL), out.shape
    assert bool(jnp.all(jnp.isfinite(out)))
    assert bool(jnp.all((out >= 0.0) & (out <= 1.0)))   # sigmoid output range

    ref = _reference_forward(params, x, channels)
    max_err = float(jnp.max(jnp.abs(out - ref)))
    # 1e-2 abs on a [0,1] sigmoid output: covers summation-order / reduced-
    # precision-stat differences while still catching any structural error
    # (a wrong fold / BN / activation gives O(0.1) deviations).
    assert max_err < 1e-2, f"mismatch vs pure-JAX reference: {max_err}"

    print("KERNEL_OK")
</pallas_src>

<mosaic_0001>
module attributes {stable_mosaic.version = 11 : i64} {
  func.func @_generator_fused_kernel(%arg0: memref<2x100xf32, #tpu.memory_space<vmem>>, %arg1: memref<100x256xbf16, #tpu.memory_space<vmem>>, %arg2: memref<1x256xf32, #tpu.memory_space<vmem>>, %arg3: memref<1x256xf32, #tpu.memory_space<vmem>>, %arg4: memref<256x128xbf16, #tpu.memory_space<vmem>>, %arg5: memref<128x4xf32, #tpu.memory_space<vmem>>, %arg6: memref<4x128xf32, #tpu.memory_space<vmem>>, %arg7: memref<1x128xf32, #tpu.memory_space<vmem>>, %arg8: memref<1x128xf32, #tpu.memory_space<vmem>>, %arg9: memref<128x25xbf16, #tpu.memory_space<vmem>>, %arg10: memref<1x1xf32, #tpu.memory_space<smem>>, %arg11: memref<1x1xf32, #tpu.memory_space<smem>>, %arg12: memref<2x25xf32, #tpu.memory_space<vmem>>) attributes {dimension_semantics = [], scalar_prefetch = 0 : i64, scratch_operands = 0 : i64, tpu.core_type = #tpu.core_type<tc>} {
    %c0 = arith.constant 0 : index
    %c0_0 = arith.constant 0 : index
    %0 = vector.load %arg0[%c0, %c0_0] : memref<2x100xf32, #tpu.memory_space<vmem>>, vector<2x100xf32>
    %1 = arith.truncf %0 : vector<2x100xf32> to vector<2x100xbf16>
    %c0_1 = arith.constant 0 : index
    %c0_2 = arith.constant 0 : index
    %2 = vector.load %arg1[%c0_1, %c0_2] : memref<100x256xbf16, #tpu.memory_space<vmem>>, vector<100x256xbf16>
    %cst = arith.constant dense<0.000000e+00> : vector<2x256xf32>
    %3 = tpu.matmul %1, %2, %cst {dimension_numbers = #tpu.dot_dimension_numbers<[1], [0], [0], [1], [0, 0, 1, 1], [], []>} : vector<2x100xbf16>, vector<100x256xbf16>, vector<2x256xf32> -> vector<2x256xf32>
    %cst_3 = arith.constant dense<0.000000e+00> : vector<256xf32>
    %4 = vector.multi_reduction <add>, %3, %cst_3 [0] : vector<2x256xf32> to vector<256xf32>
    %5 = vector.shape_cast %4 : vector<256xf32> to vector<1x256xf32>
    %cst_4 = arith.constant 5.000000e-01 : f32
    %6 = vector.broadcast %cst_4 : f32 to vector<1x256xf32>
    %7 = arith.mulf %5, %6 : vector<1x256xf32>
    %8 = arith.mulf %3, %3 : vector<2x256xf32>
    %cst_5 = arith.constant dense<0.000000e+00> : vector<256xf32>
    %9 = vector.multi_reduction <add>, %8, %cst_5 [0] : vector<2x256xf32> to vector<256xf32>
    %10 = vector.shape_cast %9 : vector<256xf32> to vector<1x256xf32>
    %cst_6 = arith.constant 5.000000e-01 : f32
    %11 = vector.broadcast %cst_6 : f32 to vector<1x256xf32>
    %12 = arith.mulf %10, %11 : vector<1x256xf32>
    %13 = arith.mulf %7, %7 : vector<1x256xf32>
    %14 = arith.subf %12, %13 : vector<1x256xf32>
    %cst_7 = arith.constant 9.99999974E-6 : f32
    %15 = vector.broadcast %cst_7 : f32 to vector<1x256xf32>
    %16 = arith.addf %14, %15 : vector<1x256xf32>
    %17 = math.rsqrt %16 : vector<1x256xf32>
    %c0_8 = arith.constant 0 : index
    %c0_9 = arith.constant 0 : index
    %18 = vector.load %arg2[%c0_8, %c0_9] : memref<1x256xf32, #tpu.memory_space<vmem>>, vector<1x256xf32>
    %19 = arith.mulf %17, %18 : vector<1x256xf32>
    %c0_10 = arith.constant 0 : index
    %c0_11 = arith.constant 0 : index
    %20 = vector.load %arg3[%c0_10, %c0_11] : memref<1x256xf32, #tpu.memory_space<vmem>>, vector<1x256xf32>
    %21 = arith.mulf %7, %19 : vector<1x256xf32>
    %22 = arith.subf %20, %21 : vector<1x256xf32>
    %23 = vector.broadcast %19 : vector<1x256xf32> to vector<2x256xf32>
    %24 = arith.mulf %3, %23 : vector<2x256xf32>
    %25 = vector.broadcast %22 : vector<1x256xf32> to vector<2x256xf32>
    %26 = arith.addf %24, %25 : vector<2x256xf32>
    %cst_12 = arith.constant 2.000000e-01 : f32
    %27 = vector.broadcast %cst_12 : f32 to vector<2x256xf32>
    %28 = arith.mulf %27, %26 : vector<2x256xf32>
    %29 = arith.maximumf %26, %28 : vector<2x256xf32>
    %30 = arith.truncf %29 : vector<2x256xf32> to vector<2x256xbf16>
    %c0_13 = arith.constant 0 : index
    %c0_14 = arith.constant 0 : index
    %31 = vector.load %arg4[%c0_13, %c0_14] : memref<256x128xbf16, #tpu.memory_space<vmem>>, vector<256x128xbf16>
    %cst_15 = arith.constant dense<0.000000e+00> : vector<2x128xf32>
    %32 = tpu.matmul %30, %31, %cst_15 {dimension_numbers = #tpu.dot_dimension_numbers<[1], [0], [0], [1], [0, 0, 1, 1], [], []>} : vector<2x256xbf16>, vector<256x128xbf16>, vector<2x128xf32> -> vector<2x128xf32>
    %cst_16 = arith.constant dense<0.000000e+00> : vector<128xf32>
    %33 = vector.multi_reduction <add>, %32, %cst_16 [0] : vector<2x128xf32> to vector<128xf32>
    %34 = vector.shape_cast %33 : vector<128xf32> to vector<1x128xf32>
    %35 = arith.mulf %32, %32 : vector<2x128xf32>
    %cst_17 = arith.constant dense<0.000000e+00> : vector<128xf32>
    %36 = vector.multi_reduction <add>, %35, %cst_17 [0] : vector<2x128xf32> to vector<128xf32>
    %37 = vector.shape_cast %36 : vector<128xf32> to vector<1x128xf32>
    %38 = tpu.concatenate %34, %37 in 0 : vector<1x128xf32>, vector<1x128xf32> -> vector<2x128xf32>
    %c0_18 = arith.constant 0 : index
    %c0_19 = arith.constant 0 : index
    %39 = vector.load %arg5[%c0_18, %c0_19] : memref<128x4xf32, #tpu.memory_space<vmem>>, vector<128x4xf32>
    %cst_20 = arith.constant dense<0.000000e+00> : vector<2x4xf32>
    %40 = tpu.matmul %38, %39, %cst_20 {dimension_numbers = #tpu.dot_dimension_numbers<[1], [0], [0], [1], [0, 0, 1, 1], [], []>} : vector<2x128xf32>, vector<128x4xf32>, vector<2x4xf32> -> vector<2x4xf32>
    %41 = vector.extract_strided_slice %40 {offsets = [0, 0], sizes = [1, 4], strides = [1, 1]} : vector<2x4xf32> to vector<1x4xf32>
    %cst_21 = arith.constant 2.000000e-02 : f32
    %42 = vector.broadcast %cst_21 : f32 to vector<1x4xf32>
    %43 = arith.mulf %41, %42 : vector<1x4xf32>
    %44 = vector.extract_strided_slice %40 {offsets = [1, 0], sizes = [1, 4], strides = [1, 1]} : vector<2x4xf32> to vector<1x4xf32>
    %cst_22 = arith.constant 2.000000e-02 : f32
    %45 = vector.broadcast %cst_22 : f32 to vector<1x4xf32>
    %46 = arith.mulf %44, %45 : vector<1x4xf32>
    %47 = arith.mulf %43, %43 : vector<1x4xf32>
    %48 = arith.subf %46, %47 : vector<1x4xf32>
    %cst_23 = arith.constant 9.99999974E-6 : f32
    %49 = vector.broadcast %cst_23 : f32 to vector<1x4xf32>
    %50 = arith.addf %48, %49 : vector<1x4xf32>
    %51 = math.rsqrt %50 : vector<1x4xf32>
    %52 = arith.mulf %43, %51 : vector<1x4xf32>
    %53 = tpu.concatenate %51, %52 in 0 : vector<1x4xf32>, vector<1x4xf32> -> vector<2x4xf32>
    %c0_24 = arith.constant 0 : index
    %c0_25 = arith.constant 0 : index
    %54 = vector.load %arg6[%c0_24, %c0_25] : memref<4x128xf32, #tpu.memory_space<vmem>>, vector<4x128xf32>
    %cst_26 = arith.constant dense<0.000000e+00> : vector<2x128xf32>
    %55 = tpu.matmul %53, %54, %cst_26 {dimension_numbers = #tpu.dot_dimension_numbers<[1], [0], [0], [1], [0, 0, 1, 1], [], []>} : vector<2x4xf32>, vector<4x128xf32>, vector<2x128xf32> -> vector<2x128xf32>
    %56 = vector.extract_strided_slice %55 {offsets = [0, 0], sizes = [1, 128], strides = [1, 1]} : vector<2x128xf32> to vector<1x128xf32>
    %c0_27 = arith.constant 0 : index
    %c0_28 = arith.constant 0 : index
    %57 = vector.load %arg7[%c0_27, %c0_28] : memref<1x128xf32, #tpu.memory_space<vmem>>, vector<1x128xf32>
    %58 = arith.mulf %56, %57 : vector<1x128xf32>
    %c0_29 = arith.constant 0 : index
    %c0_30 = arith.constant 0 : index
    %59 = vector.load %arg8[%c0_29, %c0_30] : memref<1x128xf32, #tpu.memory_space<vmem>>, vector<1x128xf32>
    %60 = vector.extract_strided_slice %55 {offsets = [1, 0], sizes = [1, 128], strides = [1, 1]} : vector<2x128xf32> to vector<1x128xf32>
    %c0_31 = arith.constant 0 : index
    %c0_32 = arith.constant 0 : index
    %61 = vector.load %arg7[%c0_31, %c0_32] : memref<1x128xf32, #tpu.memory_space<vmem>>, vector<1x128xf32>
    %62 = arith.mulf %60, %61 : vector<1x128xf32>
    %63 = arith.subf %59, %62 : vector<1x128xf32>
    %64 = vector.broadcast %58 : vector<1x128xf32> to vector<2x128xf32>
    %65 = arith.mulf %32, %64 : vector<2x128xf32>
    %66 = vector.broadcast %63 : vector<1x128xf32> to vector<2x128xf32>
    %67 = arith.addf %65, %66 : vector<2x128xf32>
    %cst_33 = arith.constant 2.000000e-01 : f32
    %68 = vector.broadcast %cst_33 : f32 to vector<2x128xf32>
    %69 = arith.mulf %68, %67 : vector<2x128xf32>
    %70 = arith.maximumf %67, %69 : vector<2x128xf32>
    %71 = arith.truncf %70 : vector<2x128xf32> to vector<2x128xbf16>
    %c0_34 = arith.constant 0 : index
    %c0_35 = arith.constant 0 : index
    %72 = vector.load %arg9[%c0_34, %c0_35] : memref<128x25xbf16, #tpu.memory_space<vmem>>, vector<128x25xbf16>
    %cst_36 = arith.constant dense<0.000000e+00> : vector<2x25xf32>
    %73 = tpu.matmul %71, %72, %cst_36 {dimension_numbers = #tpu.dot_dimension_numbers<[1], [0], [0], [1], [0, 0, 1, 1], [], []>} : vector<2x128xbf16>, vector<128x25xbf16>, vector<2x25xf32> -> vector<2x25xf32>
    %cst_37 = arith.constant dense<0.000000e+00> : vector<2xf32>
    %74 = vector.multi_reduction <add>, %73, %cst_37 [1] : vector<2x25xf32> to vector<2xf32>
    %75 = vector.shape_cast %74 : vector<2xf32> to vector<2x1xf32>
    %cst_38 = arith.constant dense<0.000000e+00> : vector<1xf32>
    %76 = vector.multi_reduction <add>, %75, %cst_38 [0] : vector<2x1xf32> to vector<1xf32>
    %77 = vector.shape_cast %76 : vector<1xf32> to vector<1x1xf32>
    %78 = arith.mulf %73, %73 : vector<2x25xf32>
    %cst_39 = arith.constant dense<0.000000e+00> : vector<2xf32>
    %79 = vector.multi_reduction <add>, %78, %cst_39 [1] : vector<2x25xf32> to vector<2xf32>
    %80 = vector.shape_cast %79 : vector<2xf32> to vector<2x1xf32>
    %cst_40 = arith.constant dense<0.000000e+00> : vector<1xf32>
    %81 = vector.multi_reduction <add>, %80, %cst_40 [0] : vector<2x1xf32> to vector<1xf32>
    %82 = vector.shape_cast %81 : vector<1xf32> to vector<1x1xf32>
    %cst_41 = arith.constant 2.000000e-02 : f32
    %83 = vector.broadcast %cst_41 : f32 to vector<1x1xf32>
    %84 = arith.mulf %77, %83 : vector<1x1xf32>
    %cst_42 = arith.constant 2.000000e-02 : f32
    %85 = vector.broadcast %cst_42 : f32 to vector<1x1xf32>
    %86 = arith.mulf %82, %85 : vector<1x1xf32>
    %87 = arith.mulf %84, %84 : vector<1x1xf32>
    %88 = arith.subf %86, %87 : vector<1x1xf32>
    %cst_43 = arith.constant 9.99999974E-6 : f32
    %89 = vector.broadcast %cst_43 : f32 to vector<1x1xf32>
    %90 = arith.addf %88, %89 : vector<1x1xf32>
    %91 = math.rsqrt %90 : vector<1x1xf32>
    %c0_44 = arith.constant 0 : index
    %c0_45 = arith.constant 0 : index
    %92 = memref.load %arg10[%c0_44, %c0_45] : memref<1x1xf32, #tpu.memory_space<smem>>
    %c0_46 = arith.constant 0 : index
    %c0_47 = arith.constant 0 : index
    %93 = memref.load %arg11[%c0_46, %c0_47] : memref<1x1xf32, #tpu.memory_space<smem>>
    %94 = vector.broadcast %92 : f32 to vector<1x1xf32>
    %95 = arith.mulf %91, %94 : vector<1x1xf32>
    %96 = arith.mulf %84, %95 : vector<1x1xf32>
    %97 = vector.broadcast %93 : f32 to vector<1x1xf32>
    %98 = arith.subf %97, %96 : vector<1x1xf32>
    %99 = vector.broadcast %95 : vector<1x1xf32> to vector<2x25xf32>
    %100 = arith.mulf %73, %99 : vector<2x25xf32>
    %101 = vector.broadcast %98 : vector<1x1xf32> to vector<2x25xf32>
    %102 = arith.addf %100, %101 : vector<2x25xf32>
    %cst_48 = arith.constant 5.000000e-01 : f32
    %103 = vector.broadcast %cst_48 : f32 to vector<2x25xf32>
    %104 = arith.mulf %103, %102 : vector<2x25xf32>
    %105 = math.tanh %104 : vector<2x25xf32>
    %cst_49 = arith.constant 1.000000e+00 : f32
    %106 = vector.broadcast %cst_49 : f32 to vector<2x25xf32>
    %107 = arith.addf %105, %106 : vector<2x25xf32>
    %cst_50 = arith.constant 5.000000e-01 : f32
    %108 = vector.broadcast %cst_50 : f32 to vector<2x25xf32>
    %109 = arith.mulf %108, %107 : vector<2x25xf32>
    %c0_51 = arith.constant 0 : index
    %c0_52 = arith.constant 0 : index
    %110 = vector.load %arg12[%c0_51, %c0_52] : memref<2x25xf32, #tpu.memory_space<vmem>>, vector<2x25xf32>
    tpu.vector_store %arg12[%c0_51, %c0_52], %109 {strides = array<i32>} : memref<2x25xf32, #tpu.memory_space<vmem>>, vector<2x25xf32>,
    return
  }
}

</mosaic_0001>

<llo_original>
// kernel: generator_forward.1
$region0: #{generator_forward.1}
  #allocation0 [shape = 'u32[]', space=smem, size = 0x4, offset = 0x4, fixed_abs, tag = 'smem constant byte address 0x4 - core index']
  #allocation1 [shape = 'u32[144,128]{1,0:T(1,128)}', space=vmem, size = 0x12000, scoped, tag = 'internal scratch']
  #allocation2 [shape = 'f32[1,1]{1,0:T(1,128)S(6)}', space=smem, size = 0x200, scoped, tag = 'scoped memory for generator_forward.1']
  #allocation3 [shape = 'f32[1,1]{1,0:T(1,128)S(6)}', space=smem, size = 0x200, scoped, tag = 'scoped memory for generator_forward.1']
  %s0 = inlined_call_operand.vmem [shape: f32[2,100], index: 0, kind: input, shape index: {}]
  %s1 = inlined_call_operand.vmem [shape: bf16[100,256], index: 1, kind: input, shape index: {}]
  %s2 = inlined_call_operand.hbm [shape: f32[1,256], index: 2, kind: input, shape index: {}]
  %s3 = inlined_call_operand.hbm [shape: f32[1,256], index: 3, kind: input, shape index: {}]
  %s4 = inlined_call_operand.vmem [shape: bf16[256,128], index: 4, kind: input, shape index: {}]
  %s5 = inlined_call_operand.vmem [shape: f32[128,4], index: 5, kind: input, shape index: {}]
  %s6 = inlined_call_operand.vmem [shape: f32[4,128], index: 6, kind: input, shape index: {}]
  %s7 = inlined_call_operand.vmem [shape: f32[1,128], index: 7, kind: input, shape index: {}]
  %s8 = inlined_call_operand.hbm [shape: f32[1,128], index: 8, kind: input, shape index: {}]
  %s9 = inlined_call_operand.vmem [shape: bf16[128,25], index: 9, kind: input, shape index: {}]
  %s10 = inlined_call_operand.<no memory space> [shape: f32[1,1], index: 10, kind: input, shape index: {}]
  %s11 = inlined_call_operand.<no memory space> [shape: f32[1,1], index: 11, kind: input, shape index: {}]
  %s12 = inlined_call_operand.vmem [shape: f32[2,25], index: 12, kind: output, shape index: {}]
  %s13 = sld [smem:[#allocation0]]
  $region70: #{generator_forward.1} parent=0
    _
  %s15 = ssub.s32 1, %s13
  %s16 = scalar_select 0, %s15, %s13
  %17 = sst [smem:[#allocation2]] %s10
  %18 = sst [smem:[#allocation3]] %s11
  $region1: #{generator_forward.1} parent=0
    #allocation4 [shape = 'u8[1024]{0}', space=vmem, size = 0x400, scoped, tag = 'input window, operand 2, single buffered']
    #allocation5 [shape = 's32[1]{0}', space=sflag, size = 0x4, scoped, tag = 'scoped memory for generator_forward.1']
    #allocation6 [shape = 'u8[1024]{0}', space=vmem, size = 0x400, scoped, tag = 'input window, operand 3, single buffered']
    #allocation7 [shape = 's32[1]{0}', space=sflag, size = 0x4, scoped, tag = 'scoped memory for generator_forward.1']
    #allocation8 [shape = 'u8[512]{0}', space=vmem, size = 0x400, scoped, tag = 'input window, operand 8, single buffered']
    %19 = vsyncpa [#allocation5], 0
    %20 = vsyncpa [#allocation7], 0
    // Predicated region
    $region2: #{generator_forward.1} parent=1 // pred_check
      _
    $region3: #{generator_forward.1} parent=1 // pred_check_branch
      %22 = sbr.rel (0) target = $region5
    $region4: #{generator_forward.1} parent=1 // pred_region
      _
    $region5: #{generator_forward.1} parent=1 // pred_fallthru
      _
    // Predicated region
    $region6: #{generator_forward.1} parent=1 // pred_check
      _
    $region7: #{generator_forward.1} parent=1 // pred_check_branch
      %24 = sbr.rel (0) target = $region9
    $region8: #{generator_forward.1} parent=1 // pred_region
      _
    $region9: #{generator_forward.1} parent=1 // pred_fallthru
      _
    // Predicated region
    $region10: #{generator_forward.1} parent=1 // pred_check
      _
    $region11: #{generator_forward.1} parent=1 // pred_check_branch
      %26 = sbr.rel (0) target = $region13
    $region12: #{generator_forward.1} parent=1 // pred_region
      %s28 = ssub.s32 32, 32
      %29 = vsyncadd [#allocation5], %s28
      %s31 = sshll.u32 [#allocation4], 4
      %s32 = int_to_ptr.vmem [resolvable:$true] %s31
      %34 = dma.hbm_to_vmem [thread:$0]  %s2, 32, %s32, [#allocation5]
    $region13: #{generator_forward.1} parent=1 // pred_fallthru
      _
    // Predicated region
    $region14: #{generator_forward.1} parent=1 // pred_check
      _
    $region15: #{generator_forward.1} parent=1 // pred_check_branch
      %36 = sbr.rel (0) target = $region17
    $region16: #{generator_forward.1} parent=1 // pred_region
      %s38 = ssub.s32 32, 32
      %39 = vsyncadd [#allocation7], %s38
      %s41 = sshll.u32 [#allocation6], 4
      %s42 = int_to_ptr.vmem [resolvable:$true] %s41
      %44 = dma.hbm_to_vmem [thread:$0]  %s3, 32, %s42, [#allocation7]
    $region17: #{generator_forward.1} parent=1 // pred_fallthru
      _
    // Predicated region
    $region18: #{generator_forward.1} parent=1 // pred_check
      _
    $region19: #{generator_forward.1} parent=1 // pred_check_branch
      %46 = sbr.rel (0) target = $region21
    $region20: #{generator_forward.1} parent=1 // pred_region
      _
    $region21: #{generator_forward.1} parent=1 // pred_fallthru
      _
    // Predicated region
    $region22: #{generator_forward.1} parent=1 // pred_check
      _
    $region23: #{generator_forward.1} parent=1 // pred_check_branch
      %48 = sbr.rel (0) target = $region25
    $region24: #{generator_forward.1} parent=1 // pred_region
      _
    $region25: #{generator_forward.1} parent=1 // pred_fallthru
      _
    // Predicated region
    $region26: #{generator_forward.1} parent=1 // pred_check
      _
    $region27: #{generator_forward.1} parent=1 // pred_check_branch
      %50 = sbr.rel (0) target = $region29
    $region28: #{generator_forward.1} parent=1 // pred_region
      _
    $region29: #{generator_forward.1} parent=1 // pred_fallthru
      _
    // Predicated region
    $region30: #{generator_forward.1} parent=1 // pred_check
      _
    $region31: #{generator_forward.1} parent=1 // pred_check_branch
      %52 = sbr.rel (0) target = $region33
    $region32: #{generator_forward.1} parent=1 // pred_region
      _
    $region33: #{generator_forward.1} parent=1 // pred_fallthru
      _
    // Predicated region
    $region34: #{generator_forward.1} parent=1 // pred_check
      _
    $region35: #{generator_forward.1} parent=1 // pred_check_branch
      %54 = sbr.rel (0) target = $region37
    $region36: #{generator_forward.1} parent=1 // pred_region
      %s56 = ssub.s32 16, 16
      %57 = vsyncadd [#allocation7], %s56
      %s59 = sshll.u32 [#allocation8], 4
      %s60 = int_to_ptr.vmem [resolvable:$true] %s59
      %62 = dma.hbm_to_vmem [thread:$0]  %s8, 16, %s60, [#allocation7]
    $region37: #{generator_forward.1} parent=1 // pred_fallthru
      _
    // Predicated region
    $region38: #{generator_forward.1} parent=1 // pred_check
      _
    $region39: #{generator_forward.1} parent=1 // pred_check_branch
      %64 = sbr.rel (0) target = $region41
    $region40: #{generator_forward.1} parent=1 // pred_region
      _
    $region41: #{generator_forward.1} parent=1 // pred_fallthru
      _
    // Predicated region
    $region42: #{generator_forward.1} parent=1 // pred_check
      _
    $region43: #{generator_forward.1} parent=1 // pred_check_branch
      %66 = sbr.rel (0) target = $region45
    $region44: #{generator_forward.1} parent=1 // pred_region
      _
    $region45: #{generator_forward.1} parent=1 // pred_fallthru
      _
    // Predicated region
    $region46: #{generator_forward.1} parent=1 // pred_check
      _
    $region47: #{generator_forward.1} parent=1 // pred_check_branch
      %68 = sbr.rel (0) target = $region49
    $region48: #{generator_forward.1} parent=1 // pred_region
      _
    $region49: #{generator_forward.1} parent=1 // pred_fallthru
      _
    // Predicated region
    $region50: #{generator_forward.1} parent=1 // pred_check
      _
    $region51: #{generator_forward.1} parent=1 // pred_check_branch
      %70 = sbr.rel (0) target = $region53
    $region52: #{generator_forward.1} parent=1 // pred_region
      %71 = dma.done [#allocation5], 32
    $region53: #{generator_forward.1} parent=1 // pred_fallthru
      _
    // Predicated region
    $region54: #{generator_forward.1} parent=1 // pred_check
      _
    $region55: #{generator_forward.1} parent=1 // pred_check_branch
      %73 = sbr.rel (0) target = $region57
    $region56: #{generator_forward.1} parent=1 // pred_region
      %74 = dma.done [#allocation7], 32
    $region57: #{generator_forward.1} parent=1 // pred_fallthru
      _
    // Predicated region
    $region58: #{generator_forward.1} parent=1 // pred_check
      _
    $region59: #{generator_forward.1} parent=1 // pred_check_branch
      %76 = sbr.rel (0) target = $region61
    $region60: #{generator_forward.1} parent=1 // pred_region
      %77 = dma.done [#allocation7], 16
    $region61: #{generator_forward.1} parent=1 // pred_fallthru
      _
    %v79 = vld [vmem:[%s0] sm:$0x3]
    %v80 = vpack.c.bf16 %v79, %v79
    %v81 = vld [vmem:[%s1] sm:$0xff]
    %v82 = vld [vmem:[%s1 + $0x8] sm:$0xff]
    %v83 = vld [vmem:[%s1 + $0x10] sm:$0xff]
    %v84 = vld [vmem:[%s1 + $0x18] sm:$0xff]
    %v85 = vld [vmem:[%s1 + $0x20] sm:$0xff]
    %v86 = vld [vmem:[%s1 + $0x28] sm:$0xff]
    %v87 = vld [vmem:[%s1 + $0x30] sm:$0xff]
    %v88 = vld [vmem:[%s1 + $0x38] sm:$0xff]
    %v89 = vld [vmem:[%s1 + $0x40] sm:$0xff]
    %v90 = vld [vmem:[%s1 + $0x48] sm:$0xff]
    %v91 = vld [vmem:[%s1 + $0x50] sm:$0xff]
    %v92 = vld [vmem:[%s1 + $0x58] sm:$0xff]
    %v93 = vld [vmem:[%s1 + $0x60] sm:$0x33]
    %v107 = vunpack.c.l.b16 %v81
    %v108 = vunpack.c.h.b16 %v81
    %v109 = vunpack.c.l.b16 %v82
    %v110 = vunpack.c.h.b16 %v82
    %v111 = vunpack.c.l.b16 %v83
    %v112 = vunpack.c.h.b16 %v83
    %v113 = vunpack.c.l.b16 %v84
    %v114 = vunpack.c.h.b16 %v84
    %v115 = vunpack.c.l.b16 %v85
    %v116 = vunpack.c.h.b16 %v85
    %v117 = vunpack.c.l.b16 %v86
    %v118 = vunpack.c.h.b16 %v86
    %v119 = vunpack.c.l.b16 %v87
    %v120 = vunpack.c.h.b16 %v87
    %v121 = vunpack.c.l.b16 %v88
    %v122 = vunpack.c.h.b16 %v88
    %v123 = vunpack.c.l.b16 %v89
    %v124 = vunpack.c.h.b16 %v89
    %v125 = vunpack.c.l.b16 %v90
    %v126 = vunpack.c.h.b16 %v90
    %v127 = vunpack.c.l.b16 %v91
    %v128 = vunpack.c.h.b16 %v91
    %v129 = vunpack.c.l.b16 %v92
    %v130 = vunpack.c.h.b16 %v92
    %v131 = vunpack.c.l.b16 %v93
    %v132 = vunpack.c.h.b16 %v93
    %v133 = vpack.c.b16 %v109, %v107
    %v134 = vpack.c.b16 %v110, %v108
    %v135 = vpack.c.b16 %v113, %v111
    %v136 = vpack.c.b16 %v114, %v112
    %v137 = vpack.c.b16 %v117, %v115
    %v138 = vpack.c.b16 %v118, %v116
    %v139 = vpack.c.b16 %v121, %v119
    %v140 = vpack.c.b16 %v122, %v120
    %v141 = vpack.c.b16 %v125, %v123
    %v142 = vpack.c.b16 %v126, %v124
    %v143 = vpack.c.b16 %v129, %v127
    %v144 = vpack.c.b16 %v130, %v128
    %v145 = vpack.c.b16 %v131, %v131
    %v146 = vpack.c.b16 %v132, %v132
    %vm159 = vcmask 818176
    %v161 = vsel %vm159, %v80, 0
    %vm163 = vcmask 1041408
    %v165 = vsel %vm163, %v145, 0
    %v168 = vsel %vm163, %v146, 0
    %170 = vmatprep.subr.bf16.mxu0 %v134
    %171 = vmatpush1.bf16.msra.mxu0 %v133
    %172 = vmatprep.subr.bf16.mxu0 %v136
    %173 = vmatpush1.bf16.msra.mxu0 %v135
    %174 = vmatprep.subr.bf16.mxu0 %v138
    %175 = vmatpush1.bf16.msra.mxu0 %v137
    %176 = vmatprep.subr.bf16.mxu0 %v140
    %177 = vmatpush1.bf16.msra.mxu0 %v139
    %178 = vmatprep.subr.bf16.mxu0 %v142
    %179 = vmatpush1.bf16.msra.mxu0 %v141
    %180 = vmatprep.subr.bf16.mxu0 %v144
    %181 = vmatpush1.bf16.msra.mxu0 %v143
    %182 = vmatprep.subr.bf16.mxu0 %v168
    %183 = vmatpush1.bf16.msra.mxu0 %v165
    %184 = vmatprep.subr.bf16.mxu0 0
    %185 = vmatpush1.bf16.msra.mxu0 0
    %186 = vmatprep.subr.bf16.mxu0 0
    %187 = vmatpush1.bf16.msra.mxu0 0
    %188 = vmatprep.subr.bf16.mxu0 0
    %189 = vmatpush1.bf16.msra.mxu0 0
    %190 = vmatprep.subr.bf16.mxu0 0
    %191 = vmatpush1.bf16.msra.mxu0 0
    %192 = vmatprep.subr.bf16.mxu0 0
    %193 = vmatpush1.bf16.msra.mxu0 0
    %194 = vmatprep.subr.bf16.mxu0 0
    %195 = vmatpush1.bf16.msra.mxu0 0
    %196 = vmatprep.subr.bf16.mxu0 0
    %197 = vmatpush1.bf16.msra.mxu0 0
    %198 = vmatprep.subr.bf16.mxu0 0
    %199 = vmatpush1.bf16.msra.mxu0 0
    %200 = vmatprep.subr.bf16.mxu0 0
    %201 = vmatpush1.bf16.msra.mxu0 0
    %202 = vmatprep.mubr.bf16.mxu0 0
    %203 = vmatmul.mubr.bf16.gmra.mrb[0].mxu0 %v161
    %v204 = vpop.f32.mrb[0].mxu0
    %v205 = vadd.f32 0.0, %v204
    %v206 = vpop.f32.mrb[0].mxu0
    %v207 = vadd.f32 0.0, %v206
    %v208 = vpop.f32.mrb[0].mxu0
    %v209 = vpop.f32.mrb[0].mxu0
    %210 = vdwg.mxu0
    %v211 = vsel %vm163, %v205, 0.0
    %v212 = vrot.slane %v211, 4
    %v213 = vadd.f32 %v211, %v212
    %v214 = vrot.slane %v213, 2
    %v215 = vadd.f32 %v213, %v214
    %v216 = vrot.slane %v215, 1
    %v217 = vadd.f32 %v215, %v216
    %v218 = vsel %vm163, %v207, 0.0
    %v219 = vrot.slane %v218, 4
    %v220 = vadd.f32 %v218, %v219
    %v221 = vrot.slane %v220, 2
    %v222 = vadd.f32 %v220, %v221
    %v223 = vrot.slane %v222, 1
    %v224 = vadd.f32 %v222, %v223
    %v225 = vmul.f32 %v217, 0.5
    %v226 = vmul.f32 %v224, 0.5
    %v227 = vmul.f32 %v205, %v205
    %v228 = vmul.f32 %v207, %v207
    %v229 = vsel %vm163, %v227, 0.0
    %v230 = vrot.slane %v229, 4
    %v231 = vadd.f32 %v229, %v230
    %v232 = vrot.slane %v231, 2
    %v233 = vadd.f32 %v231, %v232
    %v234 = vrot.slane %v233, 1
    %v235 = vadd.f32 %v233, %v234
    %v236 = vsel %vm163, %v228, 0.0
    %v237 = vrot.slane %v236, 4
    %v238 = vadd.f32 %v236, %v237
    %v239 = vrot.slane %v238, 2
    %v240 = vadd.f32 %v238, %v239
    %v241 = vrot.slane %v240, 1
    %v242 = vadd.f32 %v240, %v241
    %v243 = vmul.f32 %v235, 0.5
    %v244 = vmul.f32 %v242, 0.5
    %v245 = vmul.f32 %v225, %v225
    %v246 = vmul.f32 %v226, %v226
    %v247 = vsub.f32 %v243, %v245
    %v248 = vsub.f32 %v244, %v246
    %v249 = vadd.f32 %v247, 1e-05
    %v250 = vadd.f32 %v248, 1e-05
    %v251 = vrsqrt.pop %v249
    %v252 = vrsqrt.pop %v250
    %v253 = vld [vmem:[#allocation4] sm:$0x3]
    %v255 = vlaneseq
    %v256 = vshrl.u32 %v255, 7
    %v257 = vsub.s32 0, %v256
    %v258 = vrot.slane %v253, %v257
    %v259 = vlaneseq
    %v260 = vshrl.u32 %v259, 7
    %v261 = vsub.s32 1, %v260
    %v262 = vrot.slane %v253, %v261
    %v265 = vmul.f32 %v251, %v258
    %v266 = vmul.f32 %v252, %v262
    %v267 = vld [vmem:[#allocation6] sm:$0x3]
    %v268 = vmul.f32 %v225, %v265
    %v269 = vmul.f32 %v226, %v266
    %v272 = vcombine.low %v268, %v269
    %v274 = vunpack.c.l.s4 1966171168
    %v275 = vunpack.c.0.s8 %v274
    %v276 = vlaneseq
    %v277 = vshrl.u32 %v276, 7
    %v278 = vsub.s32 %v275, %v277
    %v279 = vrot.slane %v272, %v278
    %v281 = vunpack.c.l.s4 1966171168
    %v282 = vunpack.c.0.s8 %v281
    %v283 = vlaneseq
    %v284 = vshrl.u32 %v283, 7
    %v285 = vsub.s32 %v282, %v284
    %v286 = vrot.slane %v279, %v285
    %v288 = vsub.f32 %v267, %v286
    %v289 = vlaneseq
    %v290 = vshrl.u32 %v289, 7
    %v291 = vsub.s32 0, %v290
    %v292 = vrot.slane %v265, %v291
    %v293 = vlaneseq
    %v294 = vshrl.u32 %v293, 7
    %v295 = vsub.s32 0, %v294
    %v296 = vrot.slane %v266, %v295
    %v297 = vmul.f32 %v205, %v292
    %v298 = vmul.f32 %v207, %v296
    %v300 = vlaneseq
    %v301 = vshrl.u32 %v300, 7
    %v302 = vsub.s32 0, %v301
    %v303 = vrot.slane %v288, %v302
    %v304 = vlaneseq
    %v305 = vshrl.u32 %v304, 7
    %v306 = vsub.s32 1, %v305
    %v307 = vrot.slane %v288, %v306
    %v310 = vadd.f32 %v297, %v303
    %v311 = vadd.f32 %v298, %v307
    %v312 = vmul.f32 %v310, 0.2
    %v313 = vmul.f32 %v311, 0.2
    %v314 = vmax.f32 %v310, %v312
    %v315 = vmax.f32 %v311, %v313
    %v316 = vpack.c.bf16 %v314, %v314
    %v317 = vpack.c.bf16 %v315, %v315
    %v318 = vld [vmem:[%s4] sm:$0xf]
    %v319 = vld [vmem:[%s4 + $0x4] sm:$0xf]
    %v320 = vld [vmem:[%s4 + $0x8] sm:$0xf]
    %v321 = vld [vmem:[%s4 + $0xc] sm:$0xf]
    %v322 = vld [vmem:[%s4 + $0x10] sm:$0xf]
    %v323 = vld [vmem:[%s4 + $0x14] sm:$0xf]
    %v324 = vld [vmem:[%s4 + $0x18] sm:$0xf]
    %v325 = vld [vmem:[%s4 + $0x1c] sm:$0xf]
    %v326 = vld [vmem:[%s4 + $0x20] sm:$0xf]
    %v327 = vld [vmem:[%s4 + $0x24] sm:$0xf]
    %v328 = vld [vmem:[%s4 + $0x28] sm:$0xf]
    %v329 = vld [vmem:[%s4 + $0x2c] sm:$0xf]
    %v330 = vld [vmem:[%s4 + $0x30] sm:$0xf]
    %v331 = vld [vmem:[%s4 + $0x34] sm:$0xf]
    %v332 = vld [vmem:[%s4 + $0x38] sm:$0xf]
    %v333 = vld [vmem:[%s4 + $0x3c] sm:$0xf]
    %v334 = vld [vmem:[%s4 + $0x40] sm:$0xf]
    %v335 = vld [vmem:[%s4 + $0x44] sm:$0xf]
    %v336 = vld [vmem:[%s4 + $0x48] sm:$0xf]
    %v337 = vld [vmem:[%s4 + $0x4c] sm:$0xf]
    %v338 = vld [vmem:[%s4 + $0x50] sm:$0xf]
    %v339 = vld [vmem:[%s4 + $0x54] sm:$0xf]
    %v340 = vld [vmem:[%s4 + $0x58] sm:$0xf]
    %v341 = vld [vmem:[%s4 + $0x5c] sm:$0xf]
    %v342 = vld [vmem:[%s4 + $0x60] sm:$0xf]
    %v343 = vld [vmem:[%s4 + $0x64] sm:$0xf]
    %v344 = vld [vmem:[%s4 + $0x68] sm:$0xf]
    %v345 = vld [vmem:[%s4 + $0x6c] sm:$0xf]
    %v346 = vld [vmem:[%s4 + $0x70] sm:$0xf]
    %v347 = vld [vmem:[%s4 + $0x74] sm:$0xf]
    %v348 = vld [vmem:[%s4 + $0x78] sm:$0xf]
    %v349 = vld [vmem:[%s4 + $0x7c] sm:$0xf]
    %v382 = vunpack.c.l.b16 %v318
    %v383 = vunpack.c.l.b16 %v319
    %v384 = vunpack.c.l.b16 %v320
    %v385 = vunpack.c.l.b16 %v321
    %v386 = vunpack.c.l.b16 %v322
    %v387 = vunpack.c.l.b16 %v323
    %v388 = vunpack.c.l.b16 %v324
    %v389 = vunpack.c.l.b16 %v325
    %v390 = vunpack.c.l.b16 %v326
    %v391 = vunpack.c.l.b16 %v327
    %v392 = vunpack.c.l.b16 %v328
    %v393 = vunpack.c.l.b16 %v329
    %v394 = vunpack.c.l.b16 %v330
    %v395 = vunpack.c.l.b16 %v331
    %v396 = vunpack.c.l.b16 %v332
    %v397 = vunpack.c.l.b16 %v333
    %v398 = vunpack.c.l.b16 %v334
    %v399 = vunpack.c.l.b16 %v335
    %v400 = vunpack.c.l.b16 %v336
    %v401 = vunpack.c.l.b16 %v337
    %v402 = vunpack.c.l.b16 %v338
    %v403 = vunpack.c.l.b16 %v339
    %v404 = vunpack.c.l.b16 %v340
    %v405 = vunpack.c.l.b16 %v341
    %v406 = vunpack.c.l.b16 %v342
    %v407 = vunpack.c.l.b16 %v343
    %v408 = vunpack.c.l.b16 %v344
    %v409 = vunpack.c.l.b16 %v345
    %v410 = vunpack.c.l.b16 %v346
    %v411 = vunpack.c.l.b16 %v347
    %v412 = vunpack.c.l.b16 %v348
    %v413 = vunpack.c.l.b16 %v349
    %v414 = vpack.c.b16 %v383, %v382
    %v415 = vpack.c.b16 %v385, %v384
    %v416 = vpack.c.b16 %v387, %v386
    %v417 = vpack.c.b16 %v389, %v388
    %v418 = vpack.c.b16 %v391, %v390
    %v419 = vpack.c.b16 %v393, %v392
    %v420 = vpack.c.b16 %v395, %v394
    %v421 = vpack.c.b16 %v397, %v396
    %v422 = vpack.c.b16 %v399, %v398
    %v423 = vpack.c.b16 %v401, %v400
    %v424 = vpack.c.b16 %v403, %v402
    %v425 = vpack.c.b16 %v405, %v404
    %v426 = vpack.c.b16 %v407, %v406
    %v427 = vpack.c.b16 %v409, %v408
    %v428 = vpack.c.b16 %v411, %v410
    %v429 = vpack.c.b16 %v413, %v412
    %446 = vmatprep.subr.bf16.mxu0 0
    %447 = vmatpush1.bf16.msra.mxu0 %v414
    %448 = vmatprep.subr.bf16.mxu0 0
    %449 = vmatpush1.bf16.msra.mxu0 %v415
    %450 = vmatprep.subr.bf16.mxu0 0
    %451 = vmatpush1.bf16.msra.mxu0 %v416
    %452 = vmatprep.subr.bf16.mxu0 0
    %453 = vmatpush1.bf16.msra.mxu0 %v417
    %454 = vmatprep.subr.bf16.mxu0 0
    %455 = vmatpush1.bf16.msra.mxu0 %v418
    %456 = vmatprep.subr.bf16.mxu0 0
    %457 = vmatpush1.bf16.msra.mxu0 %v419
    %458 = vmatprep.subr.bf16.mxu0 0
    %459 = vmatpush1.bf16.msra.mxu0 %v420
    %460 = vmatprep.subr.bf16.mxu0 0
    %461 = vmatpush1.bf16.msra.mxu0 %v421
    %462 = vmatprep.subr.bf16.mxu0 0
    %463 = vmatpush1.bf16.msra.mxu0 %v422
    %464 = vmatprep.subr.bf16.mxu0 0
    %465 = vmatpush1.bf16.msra.mxu0 %v423
    %466 = vmatprep.subr.bf16.mxu0 0
    %467 = vmatpush1.bf16.msra.mxu0 %v424
    %468 = vmatprep.subr.bf16.mxu0 0
    %469 = vmatpush1.bf16.msra.mxu0 %v425
    %470 = vmatprep.subr.bf16.mxu0 0
    %471 = vmatpush1.bf16.msra.mxu0 %v426
    %472 = vmatprep.subr.bf16.mxu0 0
    %473 = vmatpush1.bf16.msra.mxu0 %v427
    %474 = vmatprep.subr.bf16.mxu0 0
    %475 = vmatpush1.bf16.msra.mxu0 %v428
    %476 = vmatprep.subr.bf16.mxu0 0
    %477 = vmatpush1.bf16.msra.mxu0 %v429
    %478 = vmatprep.mubr.bf16.mxu0 %v317
    %479 = vmatmul.mubr.bf16.gmra.mrb[0].mxu0 %v316
    %v480 = vpop.f32.mrb[0].mxu0
    %v481 = vadd.f32 0.0, %v480
    %v482 = vpop.f32.mrb[0].mxu0
    %v483 = vpop.f32.mrb[0].mxu0
    %v484 = vpop.f32.mrb[0].mxu0
    %485 = vdwg.mxu0
    %v486 = vsel %vm163, %v481, 0.0
    %v487 = vrot.slane %v486, 4
    %v488 = vadd.f32 %v486, %v487
    %v489 = vrot.slane %v488, 2
    %v490 = vadd.f32 %v488, %v489
    %v491 = vrot.slane %v490, 1
    %v492 = vadd.f32 %v490, %v491
    %v493 = vmul.f32 %v481, %v481
    %v494 = vsel %vm163, %v493, 0.0
    %v495 = vrot.slane %v494, 4
    %v496 = vadd.f32 %v494, %v495
    %v497 = vrot.slane %v496, 2
    %v498 = vadd.f32 %v496, %v497
    %v499 = vrot.slane %v498, 1
    %v500 = vadd.f32 %v498, %v499
    %vm501 = vcmask 1040384
    %v502 = vsel %vm501, %v492, %v500
    %v503 = vld [vmem:[%s5] sm:$0xff]
    %v504 = vld [vmem:[%s5 + $0x8] sm:$0xff]
    %v505 = vld [vmem:[%s5 + $0x10] sm:$0xff]
    %v506 = vld [vmem:[%s5 + $0x18] sm:$0xff]
    %v507 = vld [vmem:[%s5 + $0x20] sm:$0xff]
    %v508 = vld [vmem:[%s5 + $0x28] sm:$0xff]
    %v509 = vld [vmem:[%s5 + $0x30] sm:$0xff]
    %v510 = vld [vmem:[%s5 + $0x38] sm:$0xff]
    %v511 = vld [vmem:[%s5 + $0x40] sm:$0xff]
    %v512 = vld [vmem:[%s5 + $0x48] sm:$0xff]
    %v513 = vld [vmem:[%s5 + $0x50] sm:$0xff]
    %v514 = vld [vmem:[%s5 + $0x58] sm:$0xff]
    %v515 = vld [vmem:[%s5 + $0x60] sm:$0xff]
    %v516 = vld [vmem:[%s5 + $0x68] sm:$0xff]
    %v517 = vld [vmem:[%s5 + $0x70] sm:$0xff]
    %v518 = vld [vmem:[%s5 + $0x78] sm:$0xff]
    %519 = vmatprep.subr.mxu0 0.0
    %520 = vmatpush1.msra.mxu0 %v503
    %521 = vmatprep.subr.mxu0 0.0
    %522 = vmatpush1.msra.mxu0 %v504
    %523 = vmatprep.subr.mxu0 0.0
    %524 = vmatpush1.msra.mxu0 %v505
    %525 = vmatprep.subr.mxu0 0.0
    %526 = vmatpush1.msra.mxu0 %v506
    %527 = vmatprep.subr.mxu0 0.0
    %528 = vmatpush1.msra.mxu0 %v507
    %529 = vmatprep.subr.mxu0 0.0
    %530 = vmatpush1.msra.mxu0 %v508
    %531 = vmatprep.subr.mxu0 0.0
    %532 = vmatpush1.msra.mxu0 %v509
    %533 = vmatprep.subr.mxu0 0.0
    %534 = vmatpush1.msra.mxu0 %v510
    %535 = vmatprep.subr.mxu0 0.0
    %536 = vmatpush1.msra.mxu0 %v511
    %537 = vmatprep.subr.mxu0 0.0
    %538 = vmatpush1.msra.mxu0 %v512
    %539 = vmatprep.subr.mxu0 0.0
    %540 = vmatpush1.msra.mxu0 %v513
    %541 = vmatprep.subr.mxu0 0.0
    %542 = vmatpush1.msra.mxu0 %v514
    %543 = vmatprep.subr.mxu0 0.0
    %544 = vmatpush1.msra.mxu0 %v515
    %545 = vmatprep.subr.mxu0 0.0
    %546 = vmatpush1.msra.mxu0 %v516
    %547 = vmatprep.subr.mxu0 0.0
    %548 = vmatpush1.msra.mxu0 %v517
    %549 = vmatprep.subr.mxu0 0.0
    %550 = vmatpush1.msra.mxu0 %v518
    %551 = vmatprep.subr.mxu0 0.0
    %552 = vmatpush1.msra.mxu0 0.0
    %553 = vmatprep.subr.mxu0 0.0
    %554 = vmatpush1.msra.mxu0 0.0
    %555 = vmatprep.subr.mxu0 0.0
    %556 = vmatpush1.msra.mxu0 0.0
    %557 = vmatprep.subr.mxu0 0.0
    %558 = vmatpush1.msra.mxu0 0.0
    %559 = vmatprep.subr.mxu0 0.0
    %560 = vmatpush1.msra.mxu0 0.0
    %561 = vmatprep.subr.mxu0 0.0
    %562 = vmatpush1.msra.mxu0 0.0
    %563 = vmatprep.subr.mxu0 0.0
    %564 = vmatpush1.msra.mxu0 0.0
    %565 = vmatprep.subr.mxu0 0.0
    %566 = vmatpush1.msra.mxu0 0.0
    %567 = vmatprep.subr.mxu0 0.0
    %568 = vmatpush1.msra.mxu0 0.0
    %569 = vmatprep.subr.mxu0 0.0
    %570 = vmatpush1.msra.mxu0 0.0
    %571 = vmatprep.subr.mxu0 0.0
    %572 = vmatpush1.msra.mxu0 0.0
    %573 = vmatprep.subr.mxu0 0.0
    %574 = vmatpush1.msra.mxu0 0.0
    %575 = vmatprep.subr.mxu0 0.0
    %576 = vmatpush1.msra.mxu0 0.0
    %577 = vmatprep.subr.mxu0 0.0
    %578 = vmatpush1.msra.mxu0 0.0
    %579 = vmatprep.subr.mxu0 0.0
    %580 = vmatpush1.msra.mxu0 0.0
    %581 = vmatprep.subr.mxu0 0.0
    %582 = vmatpush1.msra.mxu0 0.0
    %583 = vmatprep.mubr.f32.mxu0 0.0
    %584 = vmatmul.mubr.f32.gmra.mrb[0].mxu0 %v502
    %v585 = vpop.f32.mrb[0].mxu0
    %v586 = vadd.f32 0.0, %v585
    %v587 = vpop.f32.mrb[0].mxu0
    %588 = vdwg.mxu0
    %v589 = vmul.f32 %v586, 0.02
    %v590 = vmul.f32 %v589, %v589
    %v592 = vrot.slane %v590, 7
    %v594 = vsub.f32 %v589, %v592
    %v595 = vadd.f32 %v594, 1e-05
    %v596 = vrsqrt.pop %v595
    %v598 = vrot.slane %v596, 1
    %v600 = vmul.f32 %v589, %v598
    %v602 = vrot.slane %v600, 7
    %v604 = vsel %vm501, %v598, %v602
    %v605 = vld [vmem:[%s6] sm:$0xf]
    %vm606 = vcmask 31744
    %v608 = vsel %vm606, %v604, 0
    %vm610 = vcmask 1043456
    %v612 = vsel %vm610, %v605, 0
    %614 = vmatprep.subr.mxu0 0.0
    %615 = vmatpush1.msra.mxu0 %v612
    %616 = vmatprep.subr.mxu0 0.0
    %617 = vmatpush1.msra.mxu0 0.0
    %618 = vmatprep.subr.mxu0 0.0
    %619 = vmatpush1.msra.mxu0 0.0
    %620 = vmatprep.subr.mxu0 0.0
    %621 = vmatpush1.msra.mxu0 0.0
    %622 = vmatprep.subr.mxu0 0.0
    %623 = vmatpush1.msra.mxu0 0.0
    %624 = vmatprep.subr.mxu0 0.0
    %625 = vmatpush1.msra.mxu0 0.0
    %626 = vmatprep.subr.mxu0 0.0
    %627 = vmatpush1.msra.mxu0 0.0
    %628 = vmatprep.subr.mxu0 0.0
    %629 = vmatpush1.msra.mxu0 0.0
    %630 = vmatprep.subr.mxu0 0.0
    %631 = vmatpush1.msra.mxu0 0.0
    %632 = vmatprep.subr.mxu0 0.0
    %633 = vmatpush1.msra.mxu0 0.0
    %634 = vmatprep.subr.mxu0 0.0
    %635 = vmatpush1.msra.mxu0 0.0
    %636 = vmatprep.subr.mxu0 0.0
    %637 = vmatpush1.msra.mxu0 0.0
    %638 = vmatprep.subr.mxu0 0.0
    %639 = vmatpush1.msra.mxu0 0.0
    %640 = vmatprep.subr.mxu0 0.0
    %641 = vmatpush1.msra.mxu0 0.0
    %642 = vmatprep.subr.mxu0 0.0
    %643 = vmatpush1.msra.mxu0 0.0
    %644 = vmatprep.subr.mxu0 0.0
    %645 = vmatpush1.msra.mxu0 0.0
    %646 = vmatprep.subr.mxu0 0.0
    %647 = vmatpush1.msra.mxu0 0.0
    %648 = vmatprep.subr.mxu0 0.0
    %649 = vmatpush1.msra.mxu0 0.0
    %650 = vmatprep.subr.mxu0 0.0
    %651 = vmatpush1.msra.mxu0 0.0
    %652 = vmatprep.subr.mxu0 0.0
    %653 = vmatpush1.msra.mxu0 0.0
    %654 = vmatprep.subr.mxu0 0.0
    %655 = vmatpush1.msra.mxu0 0.0
    %656 = vmatprep.subr.mxu0 0.0
    %657 = vmatpush1.msra.mxu0 0.0
    %658 = vmatprep.subr.mxu0 0.0
    %659 = vmatpush1.msra.mxu0 0.0
    %660 = vmatprep.subr.mxu0 0.0
    %661 = vmatpush1.msra.mxu0 0.0
    %662 = vmatprep.subr.mxu0 0.0
    %663 = vmatpush1.msra.mxu0 0.0
    %664 = vmatprep.subr.mxu0 0.0
    %665 = vmatpush1.msra.mxu0 0.0
    %666 = vmatprep.subr.mxu0 0.0
    %667 = vmatpush1.msra.mxu0 0.0
    %668 = vmatprep.subr.mxu0 0.0
    %669 = vmatpush1.msra.mxu0 0.0
    %670 = vmatprep.subr.mxu0 0.0
    %671 = vmatpush1.msra.mxu0 0.0
    %672 = vmatprep.subr.mxu0 0.0
    %673 = vmatpush1.msra.mxu0 0.0
    %674 = vmatprep.subr.mxu0 0.0
    %675 = vmatpush1.msra.mxu0 0.0
    %676 = vmatprep.subr.mxu0 0.0
    %677 = vmatpush1.msra.mxu0 0.0
    %678 = vmatprep.mubr.f32.mxu0 0.0
    %679 = vmatmul.mubr.f32.gmra.mrb[0].mxu0 %v608
    %v680 = vpop.f32.mrb[0].mxu0
    %v681 = vadd.f32 0.0, %v680
    %v682 = vpop.f32.mrb[0].mxu0
    %683 = vdwg.mxu0
    %v684 = vld [vmem:[%s7] sm:$0x1]
    %v685 = vmul.f32 %v681, %v684
    %v686 = vld [vmem:[#allocation8] sm:$0x1]
    %v688 = vlaneseq
    %v689 = vshrl.u32 %v688, 7
    %v690 = vsub.s32 0, %v689
    %v691 = vrot.slane %v684, %v690
    %v693 = vmul.f32 %v681, %v691
    %v696 = vunpack.c.l.s4 1966171168
    %v697 = vunpack.c.0.s8 %v696
    %v698 = vlaneseq
    %v699 = vshrl.u32 %v698, 7
    %v700 = vsub.s32 %v697, %v699
    %v701 = vrot.slane %v693, %v700
    %v702 = vcombine.high %v701, %v701
    %v704 = vunpack.c.l.s4 1966171168
    %v705 = vunpack.c.0.s8 %v704
    %v706 = vlaneseq
    %v707 = vshrl.u32 %v706, 7
    %v708 = vsub.s32 %v705, %v707
    %v709 = vrot.slane %v702, %v708
    %v711 = vsub.f32 %v686, %v709
    %v712 = vlaneseq
    %v713 = vshrl.u32 %v712, 7
    %v714 = vsub.s32 0, %v713
    %v715 = vrot.slane %v685, %v714
    %v716 = vmul.f32 %v481, %v715
    %v718 = vlaneseq
    %v719 = vshrl.u32 %v718, 7
    %v720 = vsub.s32 0, %v719
    %v721 = vrot.slane %v711, %v720
    %v723 = vadd.f32 %v716, %v721
    %v724 = vmul.f32 %v723, 0.2
    %v725 = vmax.f32 %v723, %v724
    %v726 = vpack.c.bf16 %v725, %v725
    %v727 = vld [vmem:[%s9] sm:$0xf]
    %v728 = vld [vmem:[%s9 + $0x4] sm:$0xf]
    %v729 = vld [vmem:[%s9 + $0x8] sm:$0xf]
    %v730 = vld [vmem:[%s9 + $0xc] sm:$0xf]
    %v731 = vld [vmem:[%s9 + $0x10] sm:$0xf]
    %v732 = vld [vmem:[%s9 + $0x14] sm:$0xf]
    %v733 = vld [vmem:[%s9 + $0x18] sm:$0xf]
    %v734 = vld [vmem:[%s9 + $0x1c] sm:$0xf]
    %v735 = vld [vmem:[%s9 + $0x20] sm:$0xf]
    %v736 = vld [vmem:[%s9 + $0x24] sm:$0xf]
    %v737 = vld [vmem:[%s9 + $0x28] sm:$0xf]
    %v738 = vld [vmem:[%s9 + $0x2c] sm:$0xf]
    %v739 = vld [vmem:[%s9 + $0x30] sm:$0xf]
    %v740 = vld [vmem:[%s9 + $0x34] sm:$0xf]
    %v741 = vld [vmem:[%s9 + $0x38] sm:$0xf]
    %v742 = vld [vmem:[%s9 + $0x3c] sm:$0xf]
    %v759 = vunpack.c.l.b16 %v727
    %v760 = vunpack.c.l.b16 %v728
    %v761 = vunpack.c.l.b16 %v729
    %v762 = vunpack.c.l.b16 %v730
    %v763 = vunpack.c.l.b16 %v731
    %v764 = vunpack.c.l.b16 %v732
    %v765 = vunpack.c.l.b16 %v733
    %v766 = vunpack.c.l.b16 %v734
    %v767 = vunpack.c.l.b16 %v735
    %v768 = vunpack.c.l.b16 %v736
    %v769 = vunpack.c.l.b16 %v737
    %v770 = vunpack.c.l.b16 %v738
    %v771 = vunpack.c.l.b16 %v739
    %v772 = vunpack.c.l.b16 %v740
    %v773 = vunpack.c.l.b16 %v741
    %v774 = vunpack.c.l.b16 %v742
    %v775 = vpack.c.b16 %v760, %v759
    %v776 = vpack.c.b16 %v762, %v761
    %v777 = vpack.c.b16 %v764, %v763
    %v778 = vpack.c.b16 %v766, %v765
    %v779 = vpack.c.b16 %v768, %v767
    %v780 = vpack.c.b16 %v770, %v769
    %v781 = vpack.c.b16 %v772, %v771
    %v782 = vpack.c.b16 %v774, %v773
    %791 = vmatprep.subr.bf16.mxu0 0
    %792 = vmatpush1.bf16.msra.mxu0 %v775
    %793 = vmatprep.subr.bf16.mxu0 0
    %794 = vmatpush1.bf16.msra.mxu0 %v776
    %795 = vmatprep.subr.bf16.mxu0 0
    %796 = vmatpush1.bf16.msra.mxu0 %v777
    %797 = vmatprep.subr.bf16.mxu0 0
    %798 = vmatpush1.bf16.msra.mxu0 %v778
    %799 = vmatprep.subr.bf16.mxu0 0
    %800 = vmatpush1.bf16.msra.mxu0 %v779
    %801 = vmatprep.subr.bf16.mxu0 0
    %802 = vmatpush1.bf16.msra.mxu0 %v780
    %803 = vmatprep.subr.bf16.mxu0 0
    %804 = vmatpush1.bf16.msra.mxu0 %v781
    %805 = vmatprep.subr.bf16.mxu0 0
    %806 = vmatpush1.bf16.msra.mxu0 %v782
    %807 = vmatprep.subr.bf16.mxu0 0
    %808 = vmatpush1.bf16.msra.mxu0 0
    %809 = vmatprep.subr.bf16.mxu0 0
    %810 = vmatpush1.bf16.msra.mxu0 0
    %811 = vmatprep.subr.bf16.mxu0 0
    %812 = vmatpush1.bf16.msra.mxu0 0
    %813 = vmatprep.subr.bf16.mxu0 0
    %814 = vmatpush1.bf16.msra.mxu0 0
    %815 = vmatprep.subr.bf16.mxu0 0
    %816 = vmatpush1.bf16.msra.mxu0 0
    %817 = vmatprep.subr.bf16.mxu0 0
    %818 = vmatpush1.bf16.msra.mxu0 0
    %819 = vmatprep.subr.bf16.mxu0 0
    %820 = vmatpush1.bf16.msra.mxu0 0
    %821 = vmatprep.subr.bf16.mxu0 0
    %822 = vmatpush1.bf16.msra.mxu0 0
    %823 = vmatprep.mubr.bf16.mxu0 0
    %824 = vmatmul.mubr.bf16.gmra.mrb[0].mxu0 %v726
    %v825 = vpop.f32.mrb[0].mxu0
    %v826 = vadd.f32 0.0, %v825
    %v827 = vpop.f32.mrb[0].mxu0
    %v828 = vpop.f32.mrb[0].mxu0
    %v829 = vpop.f32.mrb[0].mxu0
    %830 = vdwg.mxu0
    %vm831 = vcmask 197632
    %v832 = vsel %vm831, %v826, 0.0
    %833 = vadd.xlane.f32.xlu0 %v832
    %v834 = vpop.xlane.xlu0 %833
    %v835 = vsel %vm163, %v834, 0.0
    %v836 = vrot.slane %v835, 4
    %v837 = vadd.f32 %v835, %v836
    %v838 = vrot.slane %v837, 2
    %v839 = vadd.f32 %v837, %v838
    %v840 = vrot.slane %v839, 1
    %v841 = vadd.f32 %v839, %v840
    %v842 = vmul.f32 %v826, %v826
    %v843 = vsel %vm831, %v842, 0.0
    %844 = vadd.xlane.f32.xlu0 %v843
    %v845 = vpop.xlane.xlu0 %844
    %v846 = vsel %vm163, %v845, 0.0
    %v847 = vrot.slane %v846, 4
    %v848 = vadd.f32 %v846, %v847
    %v849 = vrot.slane %v848, 2
    %v850 = vadd.f32 %v848, %v849
    %v851 = vrot.slane %v850, 1
    %v852 = vadd.f32 %v850, %v851
    %v853 = vmul.f32 %v841, 0.02
    %v854 = vmul.f32 %v852, 0.02
    %v855 = vmul.f32 %v853, %v853
    %v856 = vsub.f32 %v854, %v855
    %v857 = vadd.f32 %v856, 1e-05
    %v858 = vrsqrt.pop %v857
    %s859 = sld [smem:[#allocation2]]
    %s860 = sld [smem:[#allocation3]]
    %v861 = vstv %s859
    %v862 = vmul.f32 %v858, %v861
    %v863 = vmul.f32 %v853, %v862
    %v864 = vstv %s860
    %v865 = vsub.f32 %v864, %v863
    %v866 = vmul.f32 %v826, %v862
    %v867 = vadd.f32 %v866, %v865
    %v868 = vmul.f32 %v867, 0.5
    %v869 = vtanh.pop %v868
    %v870 = vadd.f32 %v869, 1.0
    %v871 = vmul.f32 %v870, 0.5
    %872 = vst.msk [vmem:[%s12] sm:$0x3] %vm831, %v871
    // Predicated region
    $region62: #{generator_forward.1} parent=1 // pred_check
      _
    $region63: #{generator_forward.1} parent=1 // pred_check_branch
      %874 = sbr.rel (0) target = $region65
    $region64: #{generator_forward.1} parent=1 // pred_region
      _
    $region65: #{generator_forward.1} parent=1 // pred_fallthru
      _
    // Predicated region
    $region66: #{generator_forward.1} parent=1 // pred_check
      _
    $region67: #{generator_forward.1} parent=1 // pred_check_branch
      %876 = sbr.rel (0) target = $region69
    $region68: #{generator_forward.1} parent=1 // pred_region
      _
    $region69: #{generator_forward.1} parent=1 // pred_fallthru
      _
    %877 = vsyncpa [#allocation5], 1
    %878 = vsyncpa [#allocation7], 1

</llo_original>
